<compile_context>
chip_gen: v5e
topology: v5e:2x2
jax: 0.10.0
libtpu: 0.0.40
codegen_flags: <defaults>
</compile_context>

<pallas_src>
import functools

import jax
import jax.numpy as jnp
from jax.experimental import pallas as pl
from jax.experimental.pallas import tpu as pltpu


# -----------------------------------------------------------------------------
# Kernel
# -----------------------------------------------------------------------------
def _block_kernel(x_ref, w1_ref, b1_ref, w2_ref, b2_ref, o_ref, *, H):
    """Fused conv3x3+ReLU -> conv3x3+ReLU on one slab of `bb` images.

    x_ref : (bb*H, W*Cin)          input slab (rows = batch*height, lanes = width*chan)
    w1_ref: (3*W*Cin,  W*Cmid)     dy-stacked block-Toeplitz row-conv weights (conv1)
    b1_ref: (1, W*Cmid)
    w2_ref: (3*W*Cmid, W*Cmid)     dy-stacked block-Toeplitz row-conv weights (conv2)
    b2_ref: (1, W*Cmid)
    o_ref : (bb*H, W*Cmid)         lane-dense output slab
    """
    M = x_ref.shape[0]  # bb * H rows

    # Per-row 0/1 masks for the vertical taps.  Rows of the slab are b*H + y;
    # the up-tap is invalid at y == 0, the down-tap at y == H-1.  These are
    # exactly the rows where pltpu.roll wraps around, so masking them also
    # kills the circular wrap and any cross-image leakage.  (Tiny: M compares.)
    row = jax.lax.broadcasted_iota(jnp.int32, (M, 1), 0)
    y = row % H
    mask_up = (y > 0).astype(jnp.float32)        # zero at image top rows
    mask_dn = (y < H - 1).astype(jnp.float32)    # zero at image bottom rows

    def conv3x3_relu(v, w_ref, b):
        # v: (M, K), w_ref: (3K, N), b: (1, N)
        # up[i] = v[i-1] (0 at image top), dn[i] = v[i+1] (0 at image bottom).
        up = pltpu.roll(v, shift=1, axis=0) * mask_up          # sublane roll, XLU slot
        dn = pltpu.roll(v, shift=M - 1, axis=0) * mask_dn      # == roll by -1
        # Stack the three dy taps along K -> one MXU pass with K = 3K.
        cat = jnp.concatenate([up, v, dn], axis=1)             # (M, 3K)
        acc = jnp.dot(cat, w_ref[...], preferred_element_type=jnp.float32)
        return jnp.maximum(acc + b, 0.0)

    y1 = conv3x3_relu(x_ref[...], w1_ref, b1_ref[...])         # stays on-chip
    o_ref[...] = conv3x3_relu(y1, w2_ref, b2_ref[...]).astype(o_ref.dtype)


# -----------------------------------------------------------------------------
# Wrapper helpers
# -----------------------------------------------------------------------------
def _make_row_conv_weights(w_oihw, W):
    """Build dy-stacked block-Toeplitz matrix (3*W*Cin, W*Cout) from OIHW weights.

    big[ky, xin*Cin + ci, xout*Cout + co] = w[co, ci, ky, xin - xout + 1]
    (zero when the horizontal tap falls outside the kernel => width padding),
    then the ky=0,1,2 blocks are stacked along K to match the [up | v | dn]
    operand built in the kernel.
    """
    Cout, Cin = w_oihw.shape[0], w_oihw.shape[1]
    w_t = jnp.transpose(w_oihw, (2, 3, 1, 0))            # (ky, kx, Cin, Cout)
    xin = jnp.arange(W)[:, None]
    xout = jnp.arange(W)[None, :]
    kx = xin - xout + 1                                   # (W, W)
    valid = (kx >= 0) & (kx <= 2)
    kx_c = jnp.clip(kx, 0, 2)
    blocks = w_t[:, kx_c, :, :]                           # (3, W, W, Cin, Cout)
    blocks = blocks * valid[None, :, :, None, None].astype(w_oihw.dtype)
    big = jnp.transpose(blocks, (0, 1, 3, 2, 4)).reshape(3, W * Cin, W * Cout)
    return big.reshape(3 * W * Cin, W * Cout)             # dy taps stacked along K


def _pick_batch_tile(B, H, W, Cin, Cmid, *, target_rows=256, min_grid=2,
                     vmem_budget=24 * 2**20):
    """Images per grid step.

    Targets M = bb*H of ~`target_rows` MXU rows, keeps >= `min_grid` grid steps
    when B allows (so both v7x TensorCores get work), and caps bb so the
    estimated per-step VMEM stays within a v7x-safe budget.
    """
    bb = max(1, min(B, max(1, target_rows // H)))
    if B >= min_grid:
        bb = min(bb, max(1, B // min_grid))

    def est_bytes(bb_):
        M = bb_ * H
        act = 2 * M * W * Cin * 4 + 2 * M * W * Cmid * 4           # double-buffered in/out slabs
        tmp = 3 * M * 3 * W * Cmid * 4                              # up/dn/cat/y1 temporaries (headroom)
        wts = 4 * (3 * W * Cin * W * Cmid + 3 * W * Cmid * W * Cmid
                   + 2 * W * Cmid)                                  # single-buffered weights + biases
        return act + tmp + wts

    while bb > 1 and est_bytes(bb) > vmem_budget:
        bb -= 1
    return bb, est_bytes(bb)


# -----------------------------------------------------------------------------
# Forward
# -----------------------------------------------------------------------------
@jax.jit
def block_forward(x_nchw, w1, b1, w2, b2):
    """Forward pass of `Block`.

    x_nchw : (B, Cin, H, W) float32
    w1     : (Cmid, Cin, 3, 3)   b1: (Cmid,)    (PyTorch OIHW convention)
    w2     : (Cmid, Cmid, 3, 3)  b2: (Cmid,)
    returns: (B, Cmid, H, W) float32
    """
    B, Cin, H, W = x_nchw.shape
    Cmid = w1.shape[0]

    # NCHW -> NHWC -> lane-dense 2-D slab (rows = B*H, lanes = W*Cin).
    x2d = jnp.transpose(x_nchw, (0, 2, 3, 1)).reshape(B * H, W * Cin)

    w1_cat = _make_row_conv_weights(w1, W)                # (3*W*Cin,  W*Cmid)
    w2_cat = _make_row_conv_weights(w2, W)                # (3*W*Cmid, W*Cmid)
    b1_row = jnp.tile(b1, W).reshape(1, W * Cmid)
    b2_row = jnp.tile(b2, W).reshape(1, W * Cmid)

    bb, vmem_est = _pick_batch_tile(B, H, W, Cin, Cmid)
    n_steps = pl.cdiv(B, bb)
    Bp = n_steps * bb
    if Bp != B:
        # Non-divisible batch: zero-pad whole images instead of shrinking bb.
        x2d = jnp.pad(x2d, ((0, (Bp - B) * H), (0, 0)))

    # Grid-invariant operands: single-buffer (reclaims the 2nd VMEM buffer).
    const_buf = pl.Buffered(1)

    out2d = pl.pallas_call(
        functools.partial(_block_kernel, H=H),
        out_shape=jax.ShapeDtypeStruct((Bp * H, W * Cmid), jnp.float32),
        grid_spec=pltpu.PrefetchScalarGridSpec(
            num_scalar_prefetch=0,
            grid=(n_steps,),
            in_specs=[
                pl.BlockSpec((bb * H, W * Cin), lambda i: (i, 0)),
                pl.BlockSpec((3 * W * Cin, W * Cmid), lambda i: (0, 0),
                             pipeline_mode=const_buf),
                pl.BlockSpec((1, W * Cmid), lambda i: (0, 0),
                             pipeline_mode=const_buf),
                pl.BlockSpec((3 * W * Cmid, W * Cmid), lambda i: (0, 0),
                             pipeline_mode=const_buf),
                pl.BlockSpec((1, W * Cmid), lambda i: (0, 0),
                             pipeline_mode=const_buf),
            ],
            out_specs=pl.BlockSpec((bb * H, W * Cmid), lambda i: (i, 0)),
        ),
        compiler_params=pltpu.CompilerParams(
            dimension_semantics=("parallel",),
            vmem_limit_bytes=int(min(64 * 2**20, max(16 * 2**20, 2 * vmem_est))),
        ),
    )(x2d, w1_cat, b1_row, w2_cat, b2_row)

    out = out2d[: B * H].reshape(B, H, W, Cmid)
    return jnp.transpose(out, (0, 3, 1, 2))


# -----------------------------------------------------------------------------
# Pure-JAX reference (matches PyTorch Conv2d semantics)
# -----------------------------------------------------------------------------
def _reference_forward(x, w1, b1, w2, b2):
    dn = jax.lax.conv_dimension_numbers(x.shape, w1.shape, ("NCHW", "OIHW", "NCHW"))
    y1 = jax.lax.conv_general_dilated(x, w1, (1, 1), ((1, 1), (1, 1)), dimension_numbers=dn)
    y1 = jnp.maximum(y1 + b1[None, :, None, None], 0.0)
    y2 = jax.lax.conv_general_dilated(y1, w2, (1, 1), ((1, 1), (1, 1)), dimension_numbers=dn)
    y2 = jnp.maximum(y2 + b2[None, :, None, None], 0.0)
    return y2


if __name__ == "__main__":
    B, Cin, Cmid, H, W = 2, 4, 8, 16, 16

    key = jax.random.PRNGKey(0)
    kx, kw1, kb1, kw2, kb2 = jax.random.split(key, 5)

    x = jax.random.normal(kx, (B, Cin, H, W), dtype=jnp.float32)
    # Deterministic parameter init (scaled uniform, like PyTorch's default fan-in init).
    s1 = 1.0 / (Cin * 9) ** 0.5
    s2 = 1.0 / (Cmid * 9) ** 0.5
    w1 = jax.random.uniform(kw1, (Cmid, Cin, 3, 3), jnp.float32, -s1, s1)
    b1 = jax.random.uniform(kb1, (Cmid,), jnp.float32, -s1, s1)
    w2 = jax.random.uniform(kw2, (Cmid, Cmid, 3, 3), jnp.float32, -s2, s2)
    b2 = jax.random.uniform(kb2, (Cmid,), jnp.float32, -s2, s2)

    out = block_forward(x, w1, b1, w2, b2)
    out = jax.block_until_ready(out)

    ref = _reference_forward(x, w1, b1, w2, b2)
    assert out.shape == (B, Cmid, H, W), out.shape
    assert jnp.allclose(out, ref, atol=2e-4, rtol=2e-4), float(jnp.abs(out - ref).max())

    print("KERNEL_OK")
</pallas_src>

<mosaic_0001>
module attributes {stable_mosaic.version = 11 : i64} {
  func.func @_block_kernel(%arg0: i32, %arg1: memref<16x64xf32, #tpu.memory_space<vmem>>, %arg2: memref<192x128xf32, #tpu.memory_space<vmem>>, %arg3: memref<1x128xf32, #tpu.memory_space<vmem>>, %arg4: memref<384x128xf32, #tpu.memory_space<vmem>>, %arg5: memref<1x128xf32, #tpu.memory_space<vmem>>, %arg6: memref<16x128xf32, #tpu.memory_space<vmem>>) attributes {dimension_semantics = [#tpu.dimension_semantics<parallel>], iteration_bounds = array<i64: 2>, scalar_prefetch = 0 : i64, scratch_operands = 0 : i64, tpu.core_type = #tpu.core_type<tc>, window_params = [{transform_indices = @transform_0, window_bounds = array<i64: 16, 64>}, {pipeline_mode = #tpu.pipeline_mode<synchronous>, transform_indices = @transform_1, window_bounds = array<i64: 192, 128>}, {pipeline_mode = #tpu.pipeline_mode<synchronous>, transform_indices = @transform_2, window_bounds = array<i64: 1, 128>}, {pipeline_mode = #tpu.pipeline_mode<synchronous>, transform_indices = @transform_3, window_bounds = array<i64: 384, 128>}, {pipeline_mode = #tpu.pipeline_mode<synchronous>, transform_indices = @transform_4, window_bounds = array<i64: 1, 128>}, {transform_indices = @transform_5, window_bounds = array<i64: 16, 128>}]} {
    %0 = tpu.iota {dimensions = array<i32: 0>} : vector<16x1xi32>
    %c16_i32 = arith.constant 16 : i32
    %c0_i32 = arith.constant 0 : i32
    %1 = arith.cmpi eq, %c16_i32, %c0_i32 : i32
    %c1_i32 = arith.constant 1 : i32
    %2 = arith.select %1, %c1_i32, %c16_i32 : i32
    %3 = vector.broadcast %2 : i32 to vector<16x1xi32>
    %4 = arith.remsi %0, %3 : vector<16x1xi32>
    %c0_i32_0 = arith.constant 0 : i32
    %5 = vector.broadcast %c0_i32_0 : i32 to vector<16x1xi32>
    %6 = arith.cmpi ne, %4, %5 : vector<16x1xi32>
    %c0_i32_1 = arith.constant 0 : i32
    %7 = vector.broadcast %c0_i32_1 : i32 to vector<16x1xi32>
    %8 = arith.cmpi slt, %4, %7 : vector<16x1xi32>
    %c0_i32_2 = arith.constant 0 : i32
    %9 = arith.cmpi slt, %2, %c0_i32_2 : i32
    %10 = vector.broadcast %9 : i1 to vector<16x1xi1>
    %11 = vector.broadcast %10 : vector<16x1xi1> to vector<16x1xi1>
    %12 = arith.xori %8, %11 : vector<16x1xi1>
    %13 = arith.andi %12, %6 : vector<16x1xi1>
    %14 = vector.broadcast %2 : i32 to vector<16x1xi32>
    %15 = arith.addi %4, %14 : vector<16x1xi32>
    %16 = arith.select %13, %15, %4 : vector<16x1xi1>, vector<16x1xi32>
    %c0_i32_3 = arith.constant 0 : i32
    %17 = vector.broadcast %c0_i32_3 : i32 to vector<16x1xi32>
    %18 = arith.cmpi sgt, %16, %17 : vector<16x1xi32>
    %19 = arith.extui %18 : vector<16x1xi1> to vector<16x1xi32>
    %20 = arith.sitofp %19 : vector<16x1xi32> to vector<16x1xf32>
    %c15_i32 = arith.constant 15 : i32
    %21 = vector.broadcast %c15_i32 : i32 to vector<16x1xi32>
    %22 = arith.cmpi slt, %16, %21 : vector<16x1xi32>
    %23 = arith.extui %22 : vector<16x1xi1> to vector<16x1xi32>
    %24 = arith.sitofp %23 : vector<16x1xi32> to vector<16x1xf32>
    %c0 = arith.constant 0 : index
    %c0_4 = arith.constant 0 : index
    %25 = vector.load %arg1[%c0, %c0_4] : memref<16x64xf32, #tpu.memory_space<vmem>>, vector<16x64xf32>
    %c0_5 = arith.constant 0 : index
    %c0_6 = arith.constant 0 : index
    %26 = vector.load %arg3[%c0_5, %c0_6] : memref<1x128xf32, #tpu.memory_space<vmem>>, vector<1x128xf32>
    %c1_i32_7 = arith.constant 1 : i32
    %27 = tpu.dynamic_rotate %25 by %c1_i32_7 dim 0 : vector<16x64xf32>, i32 -> vector<16x64xf32>
    %28 = vector.broadcast %20 : vector<16x1xf32> to vector<16x64xf32>
    %29 = arith.mulf %27, %28 : vector<16x64xf32>
    %c15_i32_8 = arith.constant 15 : i32
    %30 = tpu.dynamic_rotate %25 by %c15_i32_8 dim 0 : vector<16x64xf32>, i32 -> vector<16x64xf32>
    %31 = vector.broadcast %24 : vector<16x1xf32> to vector<16x64xf32>
    %32 = arith.mulf %30, %31 : vector<16x64xf32>
    %33 = tpu.concatenate %29, %25, %32 in 1 : vector<16x64xf32>, vector<16x64xf32>, vector<16x64xf32> -> vector<16x192xf32>
    %c0_9 = arith.constant 0 : index
    %c0_10 = arith.constant 0 : index
    %34 = vector.load %arg2[%c0_9, %c0_10] : memref<192x128xf32, #tpu.memory_space<vmem>>, vector<192x128xf32>
    %cst = arith.constant dense<0.000000e+00> : vector<16x128xf32>
    %35 = tpu.matmul %33, %34, %cst {dimension_numbers = #tpu.dot_dimension_numbers<[1], [0], [0], [1], [0, 0, 1, 1], [], []>} : vector<16x192xf32>, vector<192x128xf32>, vector<16x128xf32> -> vector<16x128xf32>
    %36 = vector.broadcast %26 : vector<1x128xf32> to vector<16x128xf32>
    %37 = arith.addf %35, %36 : vector<16x128xf32>
    %cst_11 = arith.constant 0.000000e+00 : f32
    %38 = vector.broadcast %cst_11 : f32 to vector<16x128xf32>
    %39 = arith.maximumf %37, %38 : vector<16x128xf32>
    %c0_12 = arith.constant 0 : index
    %c0_13 = arith.constant 0 : index
    %40 = vector.load %arg5[%c0_12, %c0_13] : memref<1x128xf32, #tpu.memory_space<vmem>>, vector<1x128xf32>
    %c1_i32_14 = arith.constant 1 : i32
    %41 = tpu.dynamic_rotate %39 by %c1_i32_14 dim 0 : vector<16x128xf32>, i32 -> vector<16x128xf32>
    %42 = vector.broadcast %20 : vector<16x1xf32> to vector<16x128xf32>
    %43 = arith.mulf %41, %42 : vector<16x128xf32>
    %c15_i32_15 = arith.constant 15 : i32
    %44 = tpu.dynamic_rotate %39 by %c15_i32_15 dim 0 : vector<16x128xf32>, i32 -> vector<16x128xf32>
    %45 = vector.broadcast %24 : vector<16x1xf32> to vector<16x128xf32>
    %46 = arith.mulf %44, %45 : vector<16x128xf32>
    %47 = tpu.concatenate %43, %39, %46 in 1 : vector<16x128xf32>, vector<16x128xf32>, vector<16x128xf32> -> vector<16x384xf32>
    %c0_16 = arith.constant 0 : index
    %c0_17 = arith.constant 0 : index
    %48 = vector.load %arg4[%c0_16, %c0_17] : memref<384x128xf32, #tpu.memory_space<vmem>>, vector<384x128xf32>
    %cst_18 = arith.constant dense<0.000000e+00> : vector<16x128xf32>
    %49 = tpu.matmul %47, %48, %cst_18 {dimension_numbers = #tpu.dot_dimension_numbers<[1], [0], [0], [1], [0, 0, 1, 1], [], []>} : vector<16x384xf32>, vector<384x128xf32>, vector<16x128xf32> -> vector<16x128xf32>
    %50 = vector.broadcast %40 : vector<1x128xf32> to vector<16x128xf32>
    %51 = arith.addf %49, %50 : vector<16x128xf32>
    %cst_19 = arith.constant 0.000000e+00 : f32
    %52 = vector.broadcast %cst_19 : f32 to vector<16x128xf32>
    %53 = arith.maximumf %51, %52 : vector<16x128xf32>
    %c0_20 = arith.constant 0 : index
    %c0_21 = arith.constant 0 : index
    %54 = vector.load %arg6[%c0_20, %c0_21] : memref<16x128xf32, #tpu.memory_space<vmem>>, vector<16x128xf32>
    tpu.vector_store %arg6[%c0_20, %c0_21], %53 {strides = array<i32>} : memref<16x128xf32, #tpu.memory_space<vmem>>, vector<16x128xf32>,
    return
  }
  func.func @transform_0(%arg0: i32) -> (i32, i32) {
    %c0_i32 = arith.constant 0 : i32
    %c0_i32_0 = arith.constant 0 : i32
    return %arg0, %c0_i32 : i32, i32
  }
  func.func @transform_1(%arg0: i32) -> (i32, i32) {
    %c0_i32 = arith.constant 0 : i32
    %c0_i32_0 = arith.constant 0 : i32
    %c0_i32_1 = arith.constant 0 : i32
    return %c0_i32, %c0_i32_0 : i32, i32
  }
  func.func @transform_2(%arg0: i32) -> (i32, i32) {
    %c0_i32 = arith.constant 0 : i32
    %c0_i32_0 = arith.constant 0 : i32
    %c0_i32_1 = arith.constant 0 : i32
    return %c0_i32, %c0_i32_0 : i32, i32
  }
  func.func @transform_3(%arg0: i32) -> (i32, i32) {
    %c0_i32 = arith.constant 0 : i32
    %c0_i32_0 = arith.constant 0 : i32
    %c0_i32_1 = arith.constant 0 : i32
    return %c0_i32, %c0_i32_0 : i32, i32
  }
  func.func @transform_4(%arg0: i32) -> (i32, i32) {
    %c0_i32 = arith.constant 0 : i32
    %c0_i32_0 = arith.constant 0 : i32
    %c0_i32_1 = arith.constant 0 : i32
    return %c0_i32, %c0_i32_0 : i32, i32
  }
  func.func @transform_5(%arg0: i32) -> (i32, i32) {
    %c0_i32 = arith.constant 0 : i32
    %c0_i32_0 = arith.constant 0 : i32
    return %arg0, %c0_i32 : i32, i32
  }
}

</mosaic_0001>

<llo_original>
// kernel: tile.13
$region0: #{tile.13}
  #allocation0 [shape = 's32[1]{0}', space=sflag, size = 0x4, scoped, tag = 'scoped memory for tile.13']
  %s0 = inlined_call_operand.vmem [shape: f32[8], index: 0, kind: input, shape index: {}]
  %s1 = inlined_call_operand.vmem [shape: f32[16,8], index: 1, kind: output, shape index: {}]
  // Predicated region
  $region2: #{tile.13} parent=0 // pred_check
    _
  $region3: #{tile.13} parent=0 // pred_check_branch
    %3 = sbr.rel (0) target = $region5
  $region4: #{tile.13} parent=0 // pred_region
    _
  $region5: #{tile.13} parent=0 // pred_fallthru
    _
  %v4 = vld [vmem:[%s0] ss:$0 sm:$0xff]
  %5 = vst [vmem:[%s1] sm:$0xff] %v4
  %s6 = scalar_lea.vmem %s1, 8
  %7 = vst [vmem:[%s6] sm:$0xff] %v4

// kernel: tile.14
$region0: #{tile.14}
  %s0 = inlined_call_operand.vmem [shape: f32[16,8], index: 0, kind: input, shape index: {}]
  %s1 = inlined_call_operand.vmem [shape: f32[1,128], index: 1, kind: output, shape index: {}]
  $region1: #{tile.14} parent=0
    #allocation0 [shape = 'u8[4096]{0}', space=vmem, size = 0x1000, scoped, tag = 'scoped mem for output reshape']
    %v2 = vld [vmem:[%s0] sm:$0x1]
    %vm3 = vcmask 64512
    %4 = vst.msk [vmem:[#allocation0] sm:$0x1] %vm3, %v2
    %s5 = scalar_lea.vmem %s0, 15
    %v6 = vld [vmem:[%s5] sm:$0x1]
    %7 = vrot.lane.b32.xlu0 %v6, 120
    %v8 = vpop.permute.xlu0 %7
    %vm9 = vcmask 1048512
    %10 = vst.msk [vmem:[#allocation0] sm:$0x1] %vm9, %v8
    %s11 = scalar_lea.vmem %s0, 14
    %v12 = vld [vmem:[%s11] sm:$0x1]
    %13 = vrot.lane.b32.xlu0 %v12, 112
    %v14 = vpop.permute.xlu0 %13
    %vm15 = vcmask 982912
    %16 = vst.msk [vmem:[#allocation0] sm:$0x1] %vm15, %v14
    %s17 = scalar_lea.vmem %s0, 13
    %v18 = vld [vmem:[%s17] sm:$0x1]
    %19 = vrot.lane.b32.xlu0 %v18, 104
    %v20 = vpop.permute.xlu0 %19
    %vm21 = vcmask 917312
    %22 = vst.msk [vmem:[#allocation0] sm:$0x1] %vm21, %v20
    %s23 = scalar_lea.vmem %s0, 12
    %v24 = vld [vmem:[%s23] sm:$0x1]
    %25 = vrot.lane.b32.xlu0 %v24, 96
    %v26 = vpop.permute.xlu0 %25
    %vm27 = vcmask 851712
    %28 = vst.msk [vmem:[#allocation0] sm:$0x1] %vm27, %v26
    %s29 = scalar_lea.vmem %s0, 11
    %v30 = vld [vmem:[%s29] sm:$0x1]
    %31 = vrot.lane.b32.xlu0 %v30, 88
    %v32 = vpop.permute.xlu0 %31
    %vm33 = vcmask 786112
    %34 = vst.msk [vmem:[#allocation0] sm:$0x1] %vm33, %v32
    %s35 = scalar_lea.vmem %s0, 10
    %v36 = vld [vmem:[%s35] sm:$0x1]
    %37 = vrot.lane.b32.xlu0 %v36, 80
    %v38 = vpop.permute.xlu0 %37
    %vm39 = vcmask 720512
    %40 = vst.msk [vmem:[#allocation0] sm:$0x1] %vm39, %v38
    %s41 = scalar_lea.vmem %s0, 9
    %v42 = vld [vmem:[%s41] sm:$0x1]
    %43 = vrot.lane.b32.xlu0 %v42, 72
    %v44 = vpop.permute.xlu0 %43
    %vm45 = vcmask 654912
    %46 = vst.msk [vmem:[#allocation0] sm:$0x1] %vm45, %v44
    %s47 = scalar_lea.vmem %s0, 8
    %v48 = vld [vmem:[%s47] sm:$0x1]
    %49 = vrot.lane.b32.xlu0 %v48, 64
    %v50 = vpop.permute.xlu0 %49
    %vm51 = vcmask 589312
    %52 = vst.msk [vmem:[#allocation0] sm:$0x1] %vm51, %v50
    %s53 = scalar_lea.vmem %s0, 7
    %v54 = vld [vmem:[%s53] sm:$0x1]
    %55 = vrot.lane.b32.xlu0 %v54, 56
    %v56 = vpop.permute.xlu0 %55
    %vm57 = vcmask 523712
    %58 = vst.msk [vmem:[#allocation0] sm:$0x1] %vm57, %v56
    %s59 = scalar_lea.vmem %s0, 6
    %v60 = vld [vmem:[%s59] sm:$0x1]
    %61 = vrot.lane.b32.xlu0 %v60, 48
    %v62 = vpop.permute.xlu0 %61
    %vm63 = vcmask 458112
    %64 = vst.msk [vmem:[#allocation0] sm:$0x1] %vm63, %v62
    %s65 = scalar_lea.vmem %s0, 5
    %v66 = vld [vmem:[%s65] sm:$0x1]
    %67 = vrot.lane.b32.xlu0 %v66, 40
    %v68 = vpop.permute.xlu0 %67
    %vm69 = vcmask 392512
    %70 = vst.msk [vmem:[#allocation0] sm:$0x1] %vm69, %v68
    %s71 = scalar_lea.vmem %s0, 4
    %v72 = vld [vmem:[%s71] sm:$0x1]
    %73 = vrot.lane.b32.xlu0 %v72, 32
    %v74 = vpop.permute.xlu0 %73
    %vm75 = vcmask 326912
    %76 = vst.msk [vmem:[#allocation0] sm:$0x1] %vm75, %v74
    %s77 = scalar_lea.vmem %s0, 3
    %v78 = vld [vmem:[%s77] sm:$0x1]
    %79 = vrot.lane.b32.xlu0 %v78, 24
    %v80 = vpop.permute.xlu0 %79
    %vm81 = vcmask 261312
    %82 = vst.msk [vmem:[#allocation0] sm:$0x1] %vm81, %v80
    %s83 = scalar_lea.vmem %s0, 2
    %v84 = vld [vmem:[%s83] sm:$0x1]
    %85 = vrot.lane.b32.xlu0 %v84, 16
    %v86 = vpop.permute.xlu0 %85
    %vm87 = vcmask 195712
    %88 = vst.msk [vmem:[#allocation0] sm:$0x1] %vm87, %v86
    %s89 = scalar_lea.vmem %s0, 1
    %v90 = vld [vmem:[%s89] sm:$0x1]
    %91 = vrot.lane.b32.xlu0 %v90, 8
    %v92 = vpop.permute.xlu0 %91
    %vm93 = vcmask 130112
    %94 = vst.msk [vmem:[#allocation0] sm:$0x1] %vm93, %v92
    %s96 = ssub.s32 2, 1
    %v97 = vld [vmem:[#allocation0] sm:%s96]
    %s99 = ssub.s32 2, 1
    %100 = vst [vmem:[%s1] sm:%s99] %v97

// kernel: block_forward.1
$region0: #{block_forward.1}
  #allocation0 [shape = 'u32[]', space=smem, size = 0x4, offset = 0x4, fixed_abs, tag = 'smem constant byte address 0x4 - core index']
  #allocation1 [shape = 'u32[72,128]{1,0:T(1,128)}', space=vmem, size = 0x9000, scoped, tag = 'internal scratch']
  %s0 = inlined_call_operand.vmem [shape: f32[32,64], index: 0, kind: input, shape index: {}]
  %s1 = inlined_call_operand.vmem [shape: f32[192,128], index: 1, kind: input, shape index: {}]
  %s2 = inlined_call_operand.vmem [shape: f32[1,128], index: 2, kind: input, shape index: {}]
  %s3 = inlined_call_operand.vmem [shape: f32[384,128], index: 3, kind: input, shape index: {}]
  %s4 = inlined_call_operand.vmem [shape: f32[1,128], index: 4, kind: input, shape index: {}]
  %s5 = inlined_call_operand.vmem [shape: f32[32,128], index: 5, kind: output, shape index: {}]
  %s6 = sld [smem:[#allocation0]]
  $region53: #{block_forward.1} parent=0
    _
  %s8 = ssub.s32 1, %s6
  %s9 = scalar_select 0, %s8, %s6
  loop: start=0, step=1, limit=4
  $region2: #{block_forward.1} parent=0 // loop_pre_header
    _
  $region3: #{block_forward.1} parent=0 // loop_header
    %s11 = sphi 0, %s15
    %p12 = scmp.ge.s32.totalorder %s11, 4
    %s21 = sphi 0, %s23
    %s24 = sphi 0, %s21
    %s25 = sphi 0, %s24
    %s41 = sphi 0, %s25
    %s45 = sphi 0, %s45
    %s47 = sphi 0, %s45
    %s48 = sphi 0, %s47
    %s62 = sphi 0, %s48
    %s66 = sphi 0, %s66
    %s68 = sphi 0, %s66
    %s69 = sphi 0, %s68
    %s83 = sphi 0, %s69
    %s87 = sphi 0, %s87
    %s89 = sphi 0, %s87
    %s90 = sphi 0, %s89
    %s104 = sphi 0, %s90
    %s108 = sphi 0, %s108
    %s110 = sphi 0, %s108
    %s111 = sphi 0, %s110
    %s125 = sphi 0, %s111
    %s131 = sphi 0, %s133
    %s134 = sphi 0, %s131
    %s135 = sphi 0, %s134
    %s151 = sphi 0, %s135
  $region4: #{block_forward.1} parent=0 // loop_header_branch
    %14 = sbr.rel (%p12) target = $region8
  $region5: #{block_forward.1} parent=0 // loop_body
    %s16 = ssub.s32 %s11, 1
    %s17 = ssub.s32 %s11, 2
    %s18 = sadd.s32 %s11, 1
    %s19 = ssub.s32 %s11, %s18
    %p20 = scmp.eq.s32.totalorder %s19, 0
    %s22 = sadd.s32 %s21, 1
    %s23 = scalar_select %p20, %s21, %s22
    %p26 = pneg %p20
    %p27 = scmp.eq.s32.totalorder %s11, 1
    %p28 = por %p26, %p27
    %p29 = scmp.ne.s32.totalorder %s21, %s24
    %p30 = scmp.eq.s32.totalorder %s11, 0
    %p31 = por %p29, %p30
    %p32 = scmp.ne.s32.totalorder %s21, %s24
    %p33 = scmp.eq.s32.totalorder %s16, 1
    %p34 = por %p32, %p33
    %p35 = scmp.ne.s32.totalorder %s24, %s25
    %p36 = scmp.eq.s32.totalorder %s16, 0
    %p37 = por %p35, %p36
    %p38 = scmp.ne.s32.totalorder %s24, %s25
    %p39 = scmp.eq.s32.totalorder %s17, 1
    %p40 = por %p38, %p39
    %p42 = scmp.ne.s32.totalorder %s25, %s41
    %p43 = scmp.eq.s32.totalorder %s17, 0
    %p44 = por %p42, %p43
    %s46 = sadd.s32 %s45, 1
    %p49 = scmp.eq.s32.totalorder %s11, 1
    %p50 = scmp.ne.s32.totalorder %s45, %s47
    %p51 = scmp.eq.s32.totalorder %s11, 0
    %p52 = por %p50, %p51
    %p53 = scmp.ne.s32.totalorder %s45, %s47
    %p54 = scmp.eq.s32.totalorder %s16, 1
    %p55 = por %p53, %p54
    %p56 = scmp.ne.s32.totalorder %s47, %s48
    %p57 = scmp.eq.s32.totalorder %s16, 0
    %p58 = por %p56, %p57
    %p59 = scmp.ne.s32.totalorder %s47, %s48
    %p60 = scmp.eq.s32.totalorder %s17, 1
    %p61 = por %p59, %p60
    %p63 = scmp.ne.s32.totalorder %s48, %s62
    %p64 = scmp.eq.s32.totalorder %s17, 0
    %p65 = por %p63, %p64
    %s67 = sadd.s32 %s66, 1
    %p70 = scmp.eq.s32.totalorder %s11, 1
    %p71 = scmp.ne.s32.totalorder %s66, %s68
    %p72 = scmp.eq.s32.totalorder %s11, 0
    %p73 = por %p71, %p72
    %p74 = scmp.ne.s32.totalorder %s66, %s68
    %p75 = scmp.eq.s32.totalorder %s16, 1
    %p76 = por %p74, %p75
    %p77 = scmp.ne.s32.totalorder %s68, %s69
    %p78 = scmp.eq.s32.totalorder %s16, 0
    %p79 = por %p77, %p78
    %p80 = scmp.ne.s32.totalorder %s68, %s69
    %p81 = scmp.eq.s32.totalorder %s17, 1
    %p82 = por %p80, %p81
    %p84 = scmp.ne.s32.totalorder %s69, %s83
    %p85 = scmp.eq.s32.totalorder %s17, 0
    %p86 = por %p84, %p85
    %s88 = sadd.s32 %s87, 1
    %p91 = scmp.eq.s32.totalorder %s11, 1
    %p92 = scmp.ne.s32.totalorder %s87, %s89
    %p93 = scmp.eq.s32.totalorder %s11, 0
    %p94 = por %p92, %p93
    %p95 = scmp.ne.s32.totalorder %s87, %s89
    %p96 = scmp.eq.s32.totalorder %s16, 1
    %p97 = por %p95, %p96
    %p98 = scmp.ne.s32.totalorder %s89, %s90
    %p99 = scmp.eq.s32.totalorder %s16, 0
    %p100 = por %p98, %p99
    %p101 = scmp.ne.s32.totalorder %s89, %s90
    %p102 = scmp.eq.s32.totalorder %s17, 1
    %p103 = por %p101, %p102
    %p105 = scmp.ne.s32.totalorder %s90, %s104
    %p106 = scmp.eq.s32.totalorder %s17, 0
    %p107 = por %p105, %p106
    %s109 = sadd.s32 %s108, 1
    %p112 = scmp.eq.s32.totalorder %s11, 1
    %p113 = scmp.ne.s32.totalorder %s108, %s110
    %p114 = scmp.eq.s32.totalorder %s11, 0
    %p115 = por %p113, %p114
    %p116 = scmp.ne.s32.totalorder %s108, %s110
    %p117 = scmp.eq.s32.totalorder %s16, 1
    %p118 = por %p116, %p117
    %p119 = scmp.ne.s32.totalorder %s110, %s111
    %p120 = scmp.eq.s32.totalorder %s16, 0
    %p121 = por %p119, %p120
    %p122 = scmp.ne.s32.totalorder %s110, %s111
    %p123 = scmp.eq.s32.totalorder %s17, 1
    %p124 = por %p122, %p123
    %p126 = scmp.ne.s32.totalorder %s111, %s125
    %p127 = scmp.eq.s32.totalorder %s17, 0
    %p128 = por %p126, %p127
    %s129 = ssub.s32 %s11, %s18
    %p130 = scmp.eq.s32.totalorder %s129, 0
    %s132 = sadd.s32 %s131, 1
    %s133 = scalar_select %p130, %s131, %s132
    %p136 = pneg %p130
    %p137 = scmp.eq.s32.totalorder %s11, 1
    %p138 = por %p136, %p137
    %p139 = scmp.ne.s32.totalorder %s131, %s134
    %p140 = scmp.eq.s32.totalorder %s11, 0
    %p141 = por %p139, %p140
    %p142 = scmp.ne.s32.totalorder %s131, %s134
    %p143 = scmp.eq.s32.totalorder %s16, 1
    %p144 = por %p142, %p143
    %p145 = scmp.ne.s32.totalorder %s134, %s135
    %p146 = scmp.eq.s32.totalorder %s16, 0
    %p147 = por %p145, %p146
    %p148 = scmp.ne.s32.totalorder %s134, %s135
    %p149 = scmp.eq.s32.totalorder %s17, 1
    %p150 = por %p148, %p149
    %p152 = scmp.ne.s32.totalorder %s135, %s151
    %p153 = scmp.eq.s32.totalorder %s17, 0
    %p154 = por %p152, %p153
    %p155 = scmp.le.s32.totalorder 1, %s11
    %p156 = scmp.lt.s32.totalorder %s11, 3
    %p157 = pnand %p155, %p156
    %p158 = pneg %p157
    // Predicated region
    $region9: #{block_forward.1} parent=5 // pred_check
      _
    $region10: #{block_forward.1} parent=5 // pred_check_branch
      %160 = sbr.rel (%p157) target = $region12
    $region11: #{block_forward.1} parent=5 // pred_region
      %s161 = ssub.s32 %s11, 1
      // Predicated region
      $region13: #{block_forward.1} parent=11 // pred_check
        %p162 = pneg %p58
      $region14: #{block_forward.1} parent=11 // pred_check_branch
        %164 = sbr.rel (%p162) target = $region16
      $region15: #{block_forward.1} parent=11 // pred_region
        _
      $region16: #{block_forward.1} parent=11 // pred_fallthru
        _
      // Predicated region
      $region17: #{block_forward.1} parent=11 // pred_check
        %p165 = pneg %p79
      $region18: #{block_forward.1} parent=11 // pred_check_branch
        %167 = sbr.rel (%p165) target = $region20
      $region19: #{block_forward.1} parent=11 // pred_region
        _
      $region20: #{block_forward.1} parent=11 // pred_fallthru
        _
      // Predicated region
      $region21: #{block_forward.1} parent=11 // pred_check
        %p168 = pneg %p100
      $region22: #{block_forward.1} parent=11 // pred_check_branch
        %170 = sbr.rel (%p168) target = $region24
      $region23: #{block_forward.1} parent=11 // pred_region
        _
      $region24: #{block_forward.1} parent=11 // pred_fallthru
        _
      // Predicated region
      $region25: #{block_forward.1} parent=11 // pred_check
        %p171 = pneg %p121
      $region26: #{block_forward.1} parent=11 // pred_check_branch
        %173 = sbr.rel (%p171) target = $region28
      $region27: #{block_forward.1} parent=11 // pred_region
        _
      $region28: #{block_forward.1} parent=11 // pred_fallthru
        _
    $region12: #{block_forward.1} parent=5 // pred_fallthru
      _
    %p174 = scmp.lt.s32.totalorder %s11, 2
    // Predicated region
    $region29: #{block_forward.1} parent=5 // pred_check
      %p175 = pneg %p174
    $region30: #{block_forward.1} parent=5 // pred_check_branch
      %177 = sbr.rel (%p175) target = $region32
    $region31: #{block_forward.1} parent=5 // pred_region
      // Predicated region
      $region33: #{block_forward.1} parent=31 // pred_check
        %p178 = pneg %p31
      $region34: #{block_forward.1} parent=31 // pred_check_branch
        %180 = sbr.rel (%p178) target = $region36
      $region35: #{block_forward.1} parent=31 // pred_region
        %s181 = smul.u32 2, %s11
        %p182 = scmp.lt.s32.totalorder %s181, 3
        %s183 = scalar_select %p182, %s181, 3
        %s184 = smul.addr %s183, 8
        %s185 = scalar_lea.vmem %s0, %s184
        %s186 = smul.u32 2, %s11
      $region36: #{block_forward.1} parent=31 // pred_fallthru
        _
    $region32: #{block_forward.1} parent=5 // pred_fallthru
      _
    %p187 = scmp.le.s32.totalorder 1, %s11
    %p188 = scmp.lt.s32.totalorder %s11, 3
    %p189 = pnand %p187, %p188
    %p190 = pneg %p189
    // Predicated region
    $region37: #{block_forward.1} parent=5 // pred_check
      _
    $region38: #{block_forward.1} parent=5 // pred_check_branch
      %192 = sbr.rel (%p189) target = $region40
    $region39: #{block_forward.1} parent=5 // pred_region
      %s193 = ssub.s32 %s11, 1
      %s194 = smul.u32 2, %s16
      %p195 = scmp.lt.s32.totalorder %s194, 3
      %s196 = scalar_select %p195, %s194, 3
      %s197 = smul.addr %s196, 8
      %s198 = scalar_lea.vmem %s0, %s197
      %p199 = pneg %p37
      %p200 = pneg %p34
      %p201 = pneg %p58
      %p202 = pneg %p55
      %p203 = pneg %p79
      %p204 = pneg %p76
      %p205 = pneg %p100
      %p206 = pneg %p97
      %p207 = pneg %p121
      %p208 = pneg %p118
      %p209 = pneg %p147
      %p210 = pneg %p144
      %s211 = smul.u32 2, %s16
      %p212 = scmp.lt.s32.totalorder %s211, 3
      %s213 = scalar_select %p212, %s211, 3
      %s214 = smul.addr %s213, 8
      %s215 = scalar_lea.vmem %s5, %s214
      %s216 = smul.u32 2, %s16
      %p217 = scmp.lt.s32.totalorder %s216, 3
      %s218 = scalar_select %p217, %s216, 3
      %s219 = smul.addr %s218, 8
      %s220 = scalar_lea.vmem %s0, %s219
      %s221 = smul.u32 2, %s16
      %s222 = smul.u32 2, %s16
      %p223 = scmp.lt.s32.totalorder %s222, 3
      %s224 = scalar_select %p223, %s222, 3
      %s225 = smul.addr %s224, 8
      %s226 = scalar_lea.vmem %s5, %s225
      %s227 = smul.u32 2, %s16
      %v228 = vlaneseq
      %v229 = vshrl.u32 %v228, 7
      %v230 = vadd.s32 %v229, 8
      %vm231 = vcmp.lt.s32.totalorder %v229, 0
      %v232 = vsub.s32 0, %v229
      %v233 = vsel %vm231, %v232, %v229
      %v234 = vshrl.u32 %v233, 4
      %v235 = vand.u32 %v233, 15
      %v236 = vsub.s32 0, %v235
      %v237 = vsel %vm231, %v236, %v235
      %vm238 = vcmp.lt.s32.totalorder %v230, 0
      %v239 = vsub.s32 0, %v230
      %v240 = vsel %vm238, %v239, %v230
      %v241 = vshrl.u32 %v240, 4
      %v242 = vand.u32 %v240, 15
      %v243 = vsub.s32 0, %v242
      %v244 = vsel %vm238, %v243, %v242
      %vm245 = vcmp.ne.s32.totalorder %v237, 0
      %vm246 = vcmp.ne.s32.totalorder %v244, 0
      %vm247 = vcmp.lt.s32.totalorder %v237, 0
      %vm248 = vcmp.lt.s32.totalorder %v244, 0
      %vm249 = vmand %vm247, %vm245
      %vm250 = vmand %vm248, %vm246
      %v251 = vadd.s32 %v237, 16
      %v252 = vadd.s32 %v244, 16
      %v253 = vsel %vm249, %v251, %v237
      %v254 = vsel %vm250, %v252, %v244
      %vm255 = vcmp.gt.s32.totalorder %v253, 0
      %vm256 = vcmp.gt.s32.totalorder %v254, 0
      %v257 = vsel %vm255, 1, 0
      %v258 = vsel %vm256, 1, 0
      %v259 = vcvt.s32.f32 %v257
      %v260 = vcvt.s32.f32 %v258
      %vm261 = vcmp.lt.s32.totalorder %v253, 15
      %vm262 = vcmp.lt.s32.totalorder %v254, 15
      %v263 = vsel %vm261, 1, 0
      %v264 = vsel %vm262, 1, 0
      %v265 = vcvt.s32.f32 %v263
      %v266 = vcvt.s32.f32 %v264
      %v267 = vld [vmem:[%s220] sm:$0xff]
      %v268 = vld [vmem:[%s220 + $0x8] sm:$0xff]
      %v269 = vld [vmem:[%s2] sm:$0x1]
      %v270 = vrot.slane %v267, 7
      %v271 = vrot.slane %v268, 7
      %vm272 = vcmp.lt.s32.totalorder %v229, 1
      %v273 = vsel %vm272, %v270, %v271
      %v274 = vsel %vm272, %v271, %v270
      %v275 = vmul.f32 %v274, %v259
      %v276 = vmul.f32 %v273, %v260
      %v277 = vrot.slane %v267, 1
      %v278 = vrot.slane %v268, 1
      %vm279 = vcmp.lt.s32.totalorder %v229, 7
      %v280 = vsel %vm279, %v277, %v278
      %v281 = vsel %vm279, %v278, %v277
      %v282 = vmul.f32 %v280, %v265
      %v283 = vmul.f32 %v281, %v266
      %286 = vrot.lane.b32.xlu0 %v267, 64
      %v287 = vpop.permute.xlu0 %286
      %288 = vrot.lane.b32.xlu0 %v268, 64
      %v289 = vpop.permute.xlu0 %288
      %vm292 = vcmask 523264
      %v293 = vsel %vm292, %v275, %v287
      %v294 = vsel %vm292, %v276, %v289
      %v295 = vld [vmem:[%s1] sm:$0xff]
      %v296 = vld [vmem:[%s1 + $0x8] sm:$0xff]
      %v297 = vld [vmem:[%s1 + $0x10] sm:$0xff]
      %v298 = vld [vmem:[%s1 + $0x18] sm:$0xff]
      %v299 = vld [vmem:[%s1 + $0x20] sm:$0xff]
      %v300 = vld [vmem:[%s1 + $0x28] sm:$0xff]
      %v301 = vld [vmem:[%s1 + $0x30] sm:$0xff]
      %v302 = vld [vmem:[%s1 + $0x38] sm:$0xff]
      %v303 = vld [vmem:[%s1 + $0x40] sm:$0xff]
      %v304 = vld [vmem:[%s1 + $0x48] sm:$0xff]
      %v305 = vld [vmem:[%s1 + $0x50] sm:$0xff]
      %v306 = vld [vmem:[%s1 + $0x58] sm:$0xff]
      %v307 = vld [vmem:[%s1 + $0x60] sm:$0xff]
      %v308 = vld [vmem:[%s1 + $0x68] sm:$0xff]
      %v309 = vld [vmem:[%s1 + $0x70] sm:$0xff]
      %v310 = vld [vmem:[%s1 + $0x78] sm:$0xff]
      %v311 = vld [vmem:[%s1 + $0x80] sm:$0xff]
      %v312 = vld [vmem:[%s1 + $0x88] sm:$0xff]
      %v313 = vld [vmem:[%s1 + $0x90] sm:$0xff]
      %v314 = vld [vmem:[%s1 + $0x98] sm:$0xff]
      %v315 = vld [vmem:[%s1 + $0xa0] sm:$0xff]
      %v316 = vld [vmem:[%s1 + $0xa8] sm:$0xff]
      %v317 = vld [vmem:[%s1 + $0xb0] sm:$0xff]
      %v318 = vld [vmem:[%s1 + $0xb8] sm:$0xff]
      %v320 = vperm.slane %v269, 0
      %v323 = vsel %vm292, %v282, 0
      %v326 = vsel %vm292, %v283, 0
      %328 = vmatpush.msra.mxu0 %v310
      %329 = vmatpush.msra.mxu0 %v309
      %330 = vmatpush.msra.mxu0 %v308
      %331 = vmatpush.msra.mxu0 %v307
      %332 = vmatpush.msra.mxu0 %v306
      %333 = vmatpush.msra.mxu0 %v305
      %334 = vmatpush.msra.mxu0 %v304
      %335 = vmatpush.msra.mxu0 %v303
      %336 = vmatpush.msra.mxu0 %v302
      %337 = vmatpush.msra.mxu0 %v301
      %338 = vmatpush.msra.mxu0 %v300
      %339 = vmatpush.msra.mxu0 %v299
      %340 = vmatpush.msra.mxu0 %v298
      %341 = vmatpush.msra.mxu0 %v297
      %342 = vmatpush.msra.mxu0 %v296
      %343 = vmatpush.msra.mxu0 %v295
      %344 = vmatmul.f32.gmra.mxu0 %v293
      %v345 = vpop.f32.mrf.mxu0
      %v346 = vadd.f32 %v320, %v345
      %347 = vmatmul.f32.gmra.mxu0 %v294
      %v348 = vpop.f32.mrf.mxu0
      %v349 = vadd.f32 %v320, %v348
      %350 = vdwg.mxu0
      %351 = vmatpush.msra.mxu0 0.0
      %352 = vmatpush.msra.mxu0 0.0
      %353 = vmatpush.msra.mxu0 0.0
      %354 = vmatpush.msra.mxu0 0.0
      %355 = vmatpush.msra.mxu0 0.0
      %356 = vmatpush.msra.mxu0 0.0
      %357 = vmatpush.msra.mxu0 0.0
      %358 = vmatpush.msra.mxu0 0.0
      %359 = vmatpush.msra.mxu0 %v318
      %360 = vmatpush.msra.mxu0 %v317
      %361 = vmatpush.msra.mxu0 %v316
      %362 = vmatpush.msra.mxu0 %v315
      %363 = vmatpush.msra.mxu0 %v314
      %364 = vmatpush.msra.mxu0 %v313
      %365 = vmatpush.msra.mxu0 %v312
      %366 = vmatpush.msra.mxu0 %v311
      %367 = vmatmul.f32.gmra.mxu0 %v323
      %v368 = vpop.f32.mrf.mxu0
      %v369 = vadd.f32 %v346, %v368
      %370 = vmatmul.f32.gmra.mxu0 %v326
      %v371 = vpop.f32.mrf.mxu0
      %v372 = vadd.f32 %v349, %v371
      %373 = vdwg.mxu0
      %v374 = vmax.f32 %v369, 0.0
      %v375 = vmax.f32 %v372, 0.0
      %v376 = vld [vmem:[%s4] sm:$0x1]
      %v377 = vrot.slane %v374, 7
      %v378 = vrot.slane %v375, 7
      %v379 = vsel %vm272, %v377, %v378
      %v380 = vsel %vm272, %v378, %v377
      %v381 = vmul.f32 %v380, %v259
      %v382 = vmul.f32 %v379, %v260
      %v383 = vrot.slane %v374, 1
      %v384 = vrot.slane %v375, 1
      %v385 = vsel %vm279, %v383, %v384
      %v386 = vsel %vm279, %v384, %v383
      %v387 = vmul.f32 %v385, %v265
      %v388 = vmul.f32 %v386, %v266
      %v389 = vld [vmem:[%s3] sm:$0xff]
      %v390 = vld [vmem:[%s3 + $0x8] sm:$0xff]
      %v391 = vld [vmem:[%s3 + $0x10] sm:$0xff]
      %v392 = vld [vmem:[%s3 + $0x18] sm:$0xff]
      %v393 = vld [vmem:[%s3 + $0x20] sm:$0xff]
      %v394 = vld [vmem:[%s3 + $0x28] sm:$0xff]
      %v395 = vld [vmem:[%s3 + $0x30] sm:$0xff]
      %v396 = vld [vmem:[%s3 + $0x38] sm:$0xff]
      %v397 = vld [vmem:[%s3 + $0x40] sm:$0xff]
      %v398 = vld [vmem:[%s3 + $0x48] sm:$0xff]
      %v399 = vld [vmem:[%s3 + $0x50] sm:$0xff]
      %v400 = vld [vmem:[%s3 + $0x58] sm:$0xff]
      %v401 = vld [vmem:[%s3 + $0x60] sm:$0xff]
      %v402 = vld [vmem:[%s3 + $0x68] sm:$0xff]
      %v403 = vld [vmem:[%s3 + $0x70] sm:$0xff]
      %v404 = vld [vmem:[%s3 + $0x78] sm:$0xff]
      %v405 = vld [vmem:[%s3 + $0x80] sm:$0xff]
      %v406 = vld [vmem:[%s3 + $0x88] sm:$0xff]
      %v407 = vld [vmem:[%s3 + $0x90] sm:$0xff]
      %v408 = vld [vmem:[%s3 + $0x98] sm:$0xff]
      %v409 = vld [vmem:[%s3 + $0xa0] sm:$0xff]
      %v410 = vld [vmem:[%s3 + $0xa8] sm:$0xff]
      %v411 = vld [vmem:[%s3 + $0xb0] sm:$0xff]
      %v412 = vld [vmem:[%s3 + $0xb8] sm:$0xff]
      %v413 = vld [vmem:[%s3 + $0xc0] sm:$0xff]
      %v414 = vld [vmem:[%s3 + $0xc8] sm:$0xff]
      %v415 = vld [vmem:[%s3 + $0xd0] sm:$0xff]
      %v416 = vld [vmem:[%s3 + $0xd8] sm:$0xff]
      %v417 = vld [vmem:[%s3 + $0xe0] sm:$0xff]
      %v418 = vld [vmem:[%s3 + $0xe8] sm:$0xff]
      %v419 = vld [vmem:[%s3 + $0xf0] sm:$0xff]
      %v420 = vld [vmem:[%s3 + $0xf8] sm:$0xff]
      %v421 = vld [vmem:[%s3 + $0x100] sm:$0xff]
      %v422 = vld [vmem:[%s3 + $0x108] sm:$0xff]
      %v423 = vld [vmem:[%s3 + $0x110] sm:$0xff]
      %v424 = vld [vmem:[%s3 + $0x118] sm:$0xff]
      %v425 = vld [vmem:[%s3 + $0x120] sm:$0xff]
      %v426 = vld [vmem:[%s3 + $0x128] sm:$0xff]
      %v427 = vld [vmem:[%s3 + $0x130] sm:$0xff]
      %v428 = vld [vmem:[%s3 + $0x138] sm:$0xff]
      %v429 = vld [vmem:[%s3 + $0x140] sm:$0xff]
      %v430 = vld [vmem:[%s3 + $0x148] sm:$0xff]
      %v431 = vld [vmem:[%s3 + $0x150] sm:$0xff]
      %v432 = vld [vmem:[%s3 + $0x158] sm:$0xff]
      %v433 = vld [vmem:[%s3 + $0x160] sm:$0xff]
      %v434 = vld [vmem:[%s3 + $0x168] sm:$0xff]
      %v435 = vld [vmem:[%s3 + $0x170] sm:$0xff]
      %v436 = vld [vmem:[%s3 + $0x178] sm:$0xff]
      %v438 = vperm.slane %v376, 0
      %440 = vmatpush.msra.mxu0 %v404
      %441 = vmatpush.msra.mxu0 %v403
      %442 = vmatpush.msra.mxu0 %v402
      %443 = vmatpush.msra.mxu0 %v401
      %444 = vmatpush.msra.mxu0 %v400
      %445 = vmatpush.msra.mxu0 %v399
      %446 = vmatpush.msra.mxu0 %v398
      %447 = vmatpush.msra.mxu0 %v397
      %448 = vmatpush.msra.mxu0 %v396
      %449 = vmatpush.msra.mxu0 %v395
      %450 = vmatpush.msra.mxu0 %v394
      %451 = vmatpush.msra.mxu0 %v393
      %452 = vmatpush.msra.mxu0 %v392
      %453 = vmatpush.msra.mxu0 %v391
      %454 = vmatpush.msra.mxu0 %v390
      %455 = vmatpush.msra.mxu0 %v389
      %456 = vmatmul.f32.gmra.mxu0 %v381
      %v457 = vpop.f32.mrf.mxu0
      %v458 = vadd.f32 %v438, %v457
      %459 = vmatmul.f32.gmra.mxu0 %v382
      %v460 = vpop.f32.mrf.mxu0
      %v461 = vadd.f32 %v438, %v460
      %462 = vdwg.mxu0
      %463 = vmatpush.msra.mxu0 %v420
      %464 = vmatpush.msra.mxu0 %v419
      %465 = vmatpush.msra.mxu0 %v418
      %466 = vmatpush.msra.mxu0 %v417
      %467 = vmatpush.msra.mxu0 %v416
      %468 = vmatpush.msra.mxu0 %v415
      %469 = vmatpush.msra.mxu0 %v414
      %470 = vmatpush.msra.mxu0 %v413
      %471 = vmatpush.msra.mxu0 %v412
      %472 = vmatpush.msra.mxu0 %v411
      %473 = vmatpush.msra.mxu0 %v410
      %474 = vmatpush.msra.mxu0 %v409
      %475 = vmatpush.msra.mxu0 %v408
      %476 = vmatpush.msra.mxu0 %v407
      %477 = vmatpush.msra.mxu0 %v406
      %478 = vmatpush.msra.mxu0 %v405
      %479 = vmatmul.f32.gmra.mxu0 %v374
      %v480 = vpop.f32.mrf.mxu0
      %v481 = vadd.f32 %v458, %v480
      %482 = vmatmul.f32.gmra.mxu0 %v375
      %v483 = vpop.f32.mrf.mxu0
      %v484 = vadd.f32 %v461, %v483
      %485 = vdwg.mxu0
      %486 = vmatpush.msra.mxu0 %v436
      %487 = vmatpush.msra.mxu0 %v435
      %488 = vmatpush.msra.mxu0 %v434
      %489 = vmatpush.msra.mxu0 %v433
      %490 = vmatpush.msra.mxu0 %v432
      %491 = vmatpush.msra.mxu0 %v431
      %492 = vmatpush.msra.mxu0 %v430
      %493 = vmatpush.msra.mxu0 %v429
      %494 = vmatpush.msra.mxu0 %v428
      %495 = vmatpush.msra.mxu0 %v427
      %496 = vmatpush.msra.mxu0 %v426
      %497 = vmatpush.msra.mxu0 %v425
      %498 = vmatpush.msra.mxu0 %v424
      %499 = vmatpush.msra.mxu0 %v423
      %500 = vmatpush.msra.mxu0 %v422
      %501 = vmatpush.msra.mxu0 %v421
      %502 = vmatmul.f32.gmra.mxu0 %v387
      %v503 = vpop.f32.mrf.mxu0
      %v504 = vadd.f32 %v481, %v503
      %505 = vmatmul.f32.gmra.mxu0 %v388
      %v506 = vpop.f32.mrf.mxu0
      %v507 = vadd.f32 %v484, %v506
      %508 = vdwg.mxu0
      %v509 = vmax.f32 %v504, 0.0
      %v510 = vmax.f32 %v507, 0.0
      %511 = vst [vmem:[%s226] sm:$0xff] %v509
      %512 = vst [vmem:[%s226 + $0x8] sm:$0xff] %v510
      %s513 = smul.u32 2, %s16
      %p514 = scmp.lt.s32.totalorder %s513, 3
      %s515 = scalar_select %p514, %s513, 3
      %s516 = smul.addr %s515, 8
      %s517 = scalar_lea.vmem %s5, %s516
      // Predicated region
      $region41: #{block_forward.1} parent=39 // pred_check
        %p518 = pneg %p144
      $region42: #{block_forward.1} parent=39 // pred_check_branch
        %520 = sbr.rel (%p518) target = $region44
      $region43: #{block_forward.1} parent=39 // pred_region
        %s521 = smul.u32 2, %s16
      $region44: #{block_forward.1} parent=39 // pred_fallthru
        _
    $region40: #{block_forward.1} parent=5 // pred_fallthru
      _
    %p522 = scmp.le.s32.totalorder 2, %s11
    // Predicated region
    $region45: #{block_forward.1} parent=5 // pred_check
      %p523 = pneg %p522
    $region46: #{block_forward.1} parent=5 // pred_check_branch
      %525 = sbr.rel (%p523) target = $region48
    $region47: #{block_forward.1} parent=5 // pred_region
      %s526 = ssub.s32 %s11, 2
      // Predicated region
      $region49: #{block_forward.1} parent=47 // pred_check
        %p527 = pneg %p150
      $region50: #{block_forward.1} parent=47 // pred_check_branch
        %529 = sbr.rel (%p527) target = $region52
      $region51: #{block_forward.1} parent=47 // pred_region
        %s530 = smul.u32 2, %s17
        %p531 = scmp.lt.s32.totalorder %s530, 3
        %s532 = scalar_select %p531, %s530, 3
        %s533 = smul.addr %s532, 8
        %s534 = scalar_lea.vmem %s5, %s533
      $region52: #{block_forward.1} parent=47 // pred_fallthru
        _
    $region48: #{block_forward.1} parent=5 // pred_fallthru
      _
  $region6: #{block_forward.1} parent=0 // loop_footer
    %s15 = sadd.s32 1, %s11
  $region7: #{block_forward.1} parent=0 // loop_footer_branch
    %10 = sbr.rel target = $region3
  $region8: #{block_forward.1} parent=0 // loop_exit
    _

</llo_original>
